<compile_context>
chip_gen: v7x
topology: tpu7x:2x2x1
jax: 0.10.0
libtpu: 0.0.40
codegen_flags: <defaults>
</compile_context>

<pallas_src>
import functools
import math

import jax
import jax.numpy as jnp
from jax.experimental import pallas as pl
from jax.experimental.pallas import tpu as pltpu

_EPS = 1e-6
_VMEM_LIMIT = 32 * 1024 * 1024  # explicit scoped-VMEM budget (v5e default is 16 MiB)


# ---------------------------------------------------------------------------
# helpers
# ---------------------------------------------------------------------------
def _row_tile(n):
    """Largest multiple-of-8 row tile dividing n that still yields >=2 grid
    steps (keeps both v7x TensorCores busy); falls back to the full n."""
    for t in (512, 256, 128, 64, 32, 16, 8):
        if n % t == 0 and n // t >= 2:
            return t
    return n


def _fast_recip(x):
    # EUP approx reciprocal + one Newton step: the divide leaves the VALU but
    # accuracy stays ~f32 (needed for the tight check vs. the f32 reference).
    r = pl.reciprocal(x, approx=True)
    return r * (2.0 - x * r)


def _layer_norm(x, alpha, beta, eps):
    # Custom PyTorch LayerNormalization: unbiased std (d-1), eps added to std.
    d = x.shape[-1]
    mean = jnp.mean(x, axis=-1, keepdims=True)
    xc = x - mean
    var = jnp.sum(xc * xc, axis=-1, keepdims=True) * (1.0 / (d - 1))
    std = jnp.sqrt(var)
    return alpha * xc * _fast_recip(std + eps) + beta


def _prep_mask(mask, b, sq, sk):
    # Collapse the broadcastable PyTorch mask to a compact per-batch (B,Sq,Sk)
    # int8 "keep" mask: 4x less HBM traffic, exact `mask == 0` semantics.
    m = jnp.broadcast_to(mask, (b, 1, sq, sk)).reshape(b, sq, sk)
    return (m != 0).astype(jnp.int8)


# ---------------------------------------------------------------------------
# Kernel 1: (optional LayerNorm) + matmul      out = LN?(x) @ W
# ---------------------------------------------------------------------------
def _proj_kernel(*refs, has_ln, eps):
    if has_ln:
        ab_ref, x_ref, w_ref, o_ref = refs
        x = _layer_norm(x_ref[...].astype(jnp.float32), ab_ref[0], ab_ref[1], eps)
    else:
        x_ref, w_ref, o_ref = refs
        x = x_ref[...].astype(jnp.float32)
    o_ref[...] = jnp.dot(x, w_ref[...].astype(jnp.float32),
                         preferred_element_type=jnp.float32).astype(o_ref.dtype)


def proj(x2d, w, *, ln=None, eps=_EPS):
    """x2d: (N, Din), w: (Din, Dout) -> (N, Dout), LayerNorm fused if ln given."""
    n, din = x2d.shape
    dout = w.shape[1]
    tm = _row_tile(n)
    has_ln = ln is not None

    in_specs, args = [], []
    if has_ln:
        alpha, beta = ln
        ab = jnp.concatenate([jnp.reshape(alpha, (1,)),
                              jnp.reshape(beta, (1,))]).astype(jnp.float32)
        in_specs.append(pl.BlockSpec(memory_space=pltpu.MemorySpace.SMEM))
        args.append(ab)
    in_specs += [pl.BlockSpec((tm, din), lambda i: (i, 0)),
                 pl.BlockSpec((din, dout), lambda i: (0, 0))]
    args += [x2d, w]

    return pl.pallas_call(
        functools.partial(_proj_kernel, has_ln=has_ln, eps=eps),
        out_shape=jax.ShapeDtypeStruct((n, dout), x2d.dtype),
        grid_spec=pltpu.PrefetchScalarGridSpec(
            num_scalar_prefetch=0,
            grid=(n // tm,),
            in_specs=in_specs,
            out_specs=pl.BlockSpec((tm, dout), lambda i: (i, 0)),
        ),
        compiler_params=pltpu.CompilerParams(
            dimension_semantics=("parallel",),
            vmem_limit_bytes=_VMEM_LIMIT),
    )(*args)


# ---------------------------------------------------------------------------
# Kernel 2: per-batch multi-head attention (+ w_o + bias + residual) with an
# optional fused epilogue:
#   "ln_proj": also emit LN(x_new) @ W_next          (2 outputs)
#   "ln_ffn" : also apply LN + FFN + residual        (single, final output)
# ---------------------------------------------------------------------------
def _mha_kernel(*refs, num_heads, d_k, k_off, v_off, separate_kv,
                sm_scale, eps, epilogue):
    it = iter(refs)
    q_src_ref = next(it)
    kv_src_ref = next(it) if separate_kv else q_src_ref
    m_ref = next(it)
    wo_ref = next(it)
    bo_ref = next(it)
    res_ref = next(it)
    if epilogue == "ln_proj":
        ab_ref = next(it)
        we_ref = next(it)
    elif epilogue == "ln_ffn":
        ab_ref = next(it)
        w1_ref = next(it)
        b1_ref = next(it)
        w2_ref = next(it)
        b2_ref = next(it)
    o_ref = next(it)
    if epilogue == "ln_proj":
        q_out_ref = next(it)

    q_all = q_src_ref[...].astype(jnp.float32)      # (Sq, Dq)   q at cols [0, d)
    kv_all = kv_src_ref[...].astype(jnp.float32)    # (Sk, Dkv)
    mask = m_ref[0].astype(jnp.float32)              # (Sq, Sk)   nonzero == keep

    ctx_heads = []
    for hh in range(num_heads):                      # unrolled; heads stay in-register
        qh = q_all[:, hh * d_k:(hh + 1) * d_k]
        kh = kv_all[:, k_off + hh * d_k:k_off + (hh + 1) * d_k]
        vh = kv_all[:, v_off + hh * d_k:v_off + (hh + 1) * d_k]
        # q @ k^T without materializing a transpose (contract lane dims; the
        # relayout of K goes to the XLU, which has slack here).
        s = jax.lax.dot_general(qh, kh, (((1,), (1,)), ((), ())),
                                preferred_element_type=jnp.float32) * sm_scale
        s = jnp.where(mask == 0.0, -1e9, s)          # masked_fill(mask == 0, -1e9)
        mx = jnp.max(s, axis=-1, keepdims=True)
        p = jnp.exp(s - mx)
        l = jnp.sum(p, axis=-1, keepdims=True)
        ctx = jnp.dot(p, vh, preferred_element_type=jnp.float32) * _fast_recip(l)
        ctx_heads.append(ctx)
    ctx = jnp.concatenate(ctx_heads, axis=-1)        # head-merge -> (Sq, d_model)

    x_new = jnp.dot(ctx, wo_ref[...].astype(jnp.float32),
                    preferred_element_type=jnp.float32)
    x_new = x_new + bo_ref[...].astype(jnp.float32) + res_ref[...].astype(jnp.float32)

    if epilogue == "ln_ffn":
        xn = _layer_norm(x_new, ab_ref[0], ab_ref[1], eps)
        hmid = jnp.dot(xn, w1_ref[...].astype(jnp.float32),
                       preferred_element_type=jnp.float32)
        hmid = jnp.maximum(hmid + b1_ref[...].astype(jnp.float32), 0.0)
        y = jnp.dot(hmid, w2_ref[...].astype(jnp.float32),
                    preferred_element_type=jnp.float32)
        out_val = x_new + y + b2_ref[...].astype(jnp.float32)
    else:
        out_val = x_new
    o_ref[...] = out_val.astype(o_ref.dtype)

    if epilogue == "ln_proj":
        xn = _layer_norm(x_new, ab_ref[0], ab_ref[1], eps)
        q_out_ref[...] = jnp.dot(xn, we_ref[...].astype(jnp.float32),
                                 preferred_element_type=jnp.float32
                                 ).astype(q_out_ref.dtype)


def mha_fused(q_src, kv_src, mask_i8, wo, bo, residual, *, num_heads, d_model,
              epilogue="none", epilogue_params=None, eps=_EPS):
    """q_src: (B*Sq, Dq) (self-attn: packed [q|k|v]).  kv_src: (B*Sk, 2d) or None."""
    b, sq, sk = mask_i8.shape
    n_q, dq = q_src.shape
    d_k = d_model // num_heads
    separate_kv = kv_src is not None
    if separate_kv:
        k_off, v_off = 0, d_model
    else:
        k_off, v_off = d_model, 2 * d_model

    in_specs = [pl.BlockSpec((sq, dq), lambda i: (i, 0))]
    args = [q_src]
    if separate_kv:
        dkv = kv_src.shape[1]
        in_specs.append(pl.BlockSpec((sk, dkv), lambda i: (i, 0)))
        args.append(kv_src)
    in_specs += [
        pl.BlockSpec((1, sq, sk), lambda i: (i, 0, 0)),        # per-batch mask
        pl.BlockSpec((d_model, d_model), lambda i: (0, 0)),    # w_o (resident)
        pl.BlockSpec((1, d_model), lambda i: (0, 0)),          # b_o
        pl.BlockSpec((sq, d_model), lambda i: (i, 0)),         # residual
    ]
    args += [mask_i8, wo, bo.reshape(1, d_model), residual]

    out_shape = [jax.ShapeDtypeStruct((n_q, d_model), q_src.dtype)]
    out_specs = [pl.BlockSpec((sq, d_model), lambda i: (i, 0))]

    if epilogue == "ln_proj":
        alpha, beta, w_e = epilogue_params
        ab = jnp.concatenate([jnp.reshape(alpha, (1,)),
                              jnp.reshape(beta, (1,))]).astype(jnp.float32)
        de = w_e.shape[1]
        in_specs += [pl.BlockSpec(memory_space=pltpu.MemorySpace.SMEM),
                     pl.BlockSpec((d_model, de), lambda i: (0, 0))]
        args += [ab, w_e]
        out_shape.append(jax.ShapeDtypeStruct((n_q, de), q_src.dtype))
        out_specs.append(pl.BlockSpec((sq, de), lambda i: (i, 0)))
    elif epilogue == "ln_ffn":
        alpha, beta, w1, b1, w2, b2 = epilogue_params
        ab = jnp.concatenate([jnp.reshape(alpha, (1,)),
                              jnp.reshape(beta, (1,))]).astype(jnp.float32)
        d_ff = w1.shape[1]
        in_specs += [pl.BlockSpec(memory_space=pltpu.MemorySpace.SMEM),
                     pl.BlockSpec((d_model, d_ff), lambda i: (0, 0)),
                     pl.BlockSpec((1, d_ff), lambda i: (0, 0)),
                     pl.BlockSpec((d_ff, d_model), lambda i: (0, 0)),
                     pl.BlockSpec((1, d_model), lambda i: (0, 0))]
        args += [ab, w1, b1.reshape(1, d_ff), w2, b2.reshape(1, d_model)]

    multi_out = (epilogue == "ln_proj")
    kernel = functools.partial(
        _mha_kernel, num_heads=num_heads, d_k=d_k, k_off=k_off, v_off=v_off,
        separate_kv=separate_kv, sm_scale=1.0 / math.sqrt(d_k), eps=eps,
        epilogue=epilogue)

    return pl.pallas_call(
        kernel,
        out_shape=tuple(out_shape) if multi_out else out_shape[0],
        grid_spec=pltpu.PrefetchScalarGridSpec(
            num_scalar_prefetch=0,
            grid=(b,),
            in_specs=in_specs,
            out_specs=tuple(out_specs) if multi_out else out_specs[0],
        ),
        compiler_params=pltpu.CompilerParams(
            dimension_semantics=("parallel",),
            vmem_limit_bytes=_VMEM_LIMIT),
    )(*args)


# ---------------------------------------------------------------------------
# DecoderBlock forward: 4 pallas_calls total.
# ---------------------------------------------------------------------------
def decoder_block_forward(x, encoder_output, src_mask, target_mask, params):
    b, s, d = x.shape
    s_src = encoder_output.shape[1]
    h = params["self_attn"]["h"]

    x2 = x.reshape(b * s, d)
    enc2 = encoder_output.reshape(b * s_src, d)
    sa, ca, ff = params["self_attn"], params["cross_attn"], params["ffn"]

    # One-time wrapper-side layout plumbing (would be pre-packed params in a
    # real model): concatenated QKV / KV weights -> wider lane-dense matmuls.
    wqkv_self = jnp.concatenate([sa["wq"], sa["wk"], sa["wv"]], axis=1)  # (d, 3d)
    wkv_cross = jnp.concatenate([ca["wk"], ca["wv"]], axis=1)           # (d, 2d)

    tgt_mask = _prep_mask(target_mask, b, s, s)
    src_mask3 = _prep_mask(src_mask, b, s, s_src)

    # Kernel 1: encoder K/V projection for cross-attention (independent of x).
    kv_enc = proj(enc2, wkv_cross)

    # Kernel 2: LN0 + fused QKV projection for self-attention.
    qkv_self = proj(x2, wqkv_self, ln=(params["ln0_alpha"], params["ln0_beta"]))

    # Kernel 3: self-attention (heads in-kernel) + w_o + bias + residual,
    # with the next sub-layer's LN1 + w_q(cross) fused as an epilogue.
    x_sa, q_cross = mha_fused(
        qkv_self, None, tgt_mask, sa["wo"], sa["bo"], x2,
        num_heads=h, d_model=d, epilogue="ln_proj",
        epilogue_params=(params["ln1_alpha"], params["ln1_beta"], ca["wq"]))

    # Kernel 4: cross-attention + w_o + bias + residual, with LN1 + FFN +
    # residual fused as an epilogue.  (The PyTorch block reuses
    # residual_connections[1], i.e. the SAME LN1 parameters, for the FFN.)
    out = mha_fused(
        q_cross, kv_enc, src_mask3, ca["wo"], ca["bo"], x_sa,
        num_heads=h, d_model=d, epilogue="ln_ffn",
        epilogue_params=(params["ln1_alpha"], params["ln1_beta"],
                         ff["w1"], ff["b1"], ff["w2"], ff["b2"]))

    return out.reshape(b, s, d)


# ---------------------------------------------------------------------------
# Pure-JAX reference (mirrors the PyTorch math exactly)
# ---------------------------------------------------------------------------
def _reference(x, enc, src_mask, tgt_mask, params, eps=_EPS):
    def ln(t, a, bta):
        mean = jnp.mean(t, axis=-1, keepdims=True)
        tc = t - mean
        std = jnp.sqrt(jnp.sum(tc * tc, axis=-1, keepdims=True)
                       / (t.shape[-1] - 1))
        return a * tc / (std + eps) + bta

    def mha(q, k, v, mask, p):
        b, sq, d = q.shape
        sk = k.shape[1]
        h = p["h"]
        dk = d // h
        q = (q @ p["wq"]).reshape(b, sq, h, dk).transpose(0, 2, 1, 3)
        k = (k @ p["wk"]).reshape(b, sk, h, dk).transpose(0, 2, 1, 3)
        v = (v @ p["wv"]).reshape(b, sk, h, dk).transpose(0, 2, 1, 3)
        s = jnp.einsum("bhqd,bhkd->bhqk", q, k) / math.sqrt(dk)
        m = jnp.broadcast_to(mask, (b, 1, sq, sk))
        s = jnp.where(m == 0, -1e9, s)
        a = jax.nn.softmax(s, axis=-1)
        o = jnp.einsum("bhqk,bhkd->bhqd", a, v)
        o = o.transpose(0, 2, 1, 3).reshape(b, sq, d)
        return o @ p["wo"] + p["bo"]

    n = ln(x, params["ln0_alpha"], params["ln0_beta"])
    x = x + mha(n, n, n, tgt_mask, params["self_attn"])
    n = ln(x, params["ln1_alpha"], params["ln1_beta"])
    x = x + mha(n, enc, enc, src_mask, params["cross_attn"])
    n = ln(x, params["ln1_alpha"], params["ln1_beta"])
    ffo = jnp.maximum(n @ params["ffn"]["w1"] + params["ffn"]["b1"], 0.0)
    ffo = ffo @ params["ffn"]["w2"] + params["ffn"]["b2"]
    return x + ffo


# ---------------------------------------------------------------------------
if __name__ == "__main__":
    B, S, S_src = 2, 8, 8
    d_model, h, d_ff = 32, 4, 64

    key = jax.random.PRNGKey(0)
    ks = jax.random.split(key, 16)

    def w(k, shape, scale=0.1):
        return scale * jax.random.normal(k, shape, dtype=jnp.float32)

    params = {
        "ln0_alpha": jnp.full((1,), 1.1, jnp.float32),
        "ln0_beta": jnp.full((1,), 0.05, jnp.float32),
        "ln1_alpha": jnp.full((1,), 0.9, jnp.float32),
        "ln1_beta": jnp.full((1,), -0.03, jnp.float32),
        "self_attn": {
            "h": h,
            "wq": w(ks[0], (d_model, d_model)),
            "wk": w(ks[1], (d_model, d_model)),
            "wv": w(ks[2], (d_model, d_model)),
            "wo": w(ks[3], (d_model, d_model)),
            "bo": w(ks[4], (d_model,)),
        },
        "cross_attn": {
            "h": h,
            "wq": w(ks[5], (d_model, d_model)),
            "wk": w(ks[6], (d_model, d_model)),
            "wv": w(ks[7], (d_model, d_model)),
            "wo": w(ks[8], (d_model, d_model)),
            "bo": w(ks[9], (d_model,)),
        },
        "ffn": {
            "w1": w(ks[10], (d_model, d_ff)),
            "b1": w(ks[11], (d_ff,)),
            "w2": w(ks[12], (d_ff, d_model)),
            "b2": w(ks[13], (d_model,)),
        },
    }

    x = jax.random.normal(ks[14], (B, S, d_model), dtype=jnp.float32)
    enc = jax.random.normal(ks[15], (B, S_src, d_model), dtype=jnp.float32)

    # Causal target mask (1,1,S,S) and a padding-style src mask (B,1,1,S_src).
    target_mask = jnp.tril(jnp.ones((S, S), jnp.float32)).reshape(1, 1, S, S)
    src_valid = jnp.array(
        [[1.0] * S_src, [1.0] * (S_src - 2) + [0.0, 0.0]], jnp.float32)
    src_mask = src_valid.reshape(B, 1, 1, S_src)

    out = decoder_block_forward(x, enc, src_mask, target_mask, params)
    out = jax.block_until_ready(out)

    with jax.default_matmul_precision("highest"):
        ref = _reference(x, enc, src_mask, target_mask, params)
    ref = jax.block_until_ready(ref)

    assert out.shape == (B, S, d_model)
    max_err = float(jnp.max(jnp.abs(out - ref)))
    assert max_err < 5e-3, f"max abs error vs reference: {max_err}"
    print("KERNEL_OK")
</pallas_src>

<mosaic_0001>
module attributes {stable_mosaic.version = 11 : i64} {
  func.func @_proj_kernel(%arg0: i32, %arg1: memref<8x32xf32, #tpu.memory_space<vmem>>, %arg2: memref<32x64xf32, #tpu.memory_space<vmem>>, %arg3: memref<8x64xf32, #tpu.memory_space<vmem>>) attributes {dimension_semantics = [#tpu.dimension_semantics<parallel>], iteration_bounds = array<i64: 2>, scalar_prefetch = 0 : i64, scratch_operands = 0 : i64, tpu.core_type = #tpu.core_type<tc>, window_params = [{transform_indices = @transform_0, window_bounds = array<i64: 8, 32>}, {pipeline_mode = #tpu.pipeline_mode<synchronous>, transform_indices = @transform_1, window_bounds = array<i64: 32, 64>}, {transform_indices = @transform_2, window_bounds = array<i64: 8, 64>}]} {
    %c0 = arith.constant 0 : index
    %c0_0 = arith.constant 0 : index
    %0 = vector.load %arg1[%c0, %c0_0] : memref<8x32xf32, #tpu.memory_space<vmem>>, vector<8x32xf32>
    %c0_1 = arith.constant 0 : index
    %c0_2 = arith.constant 0 : index
    %1 = vector.load %arg2[%c0_1, %c0_2] : memref<32x64xf32, #tpu.memory_space<vmem>>, vector<32x64xf32>
    %cst = arith.constant dense<0.000000e+00> : vector<8x64xf32>
    %2 = tpu.matmul %0, %1, %cst {dimension_numbers = #tpu.dot_dimension_numbers<[1], [0], [0], [1], [0, 0, 1, 1], [], []>} : vector<8x32xf32>, vector<32x64xf32>, vector<8x64xf32> -> vector<8x64xf32>
    %c0_3 = arith.constant 0 : index
    %c0_4 = arith.constant 0 : index
    %3 = vector.load %arg3[%c0_3, %c0_4] : memref<8x64xf32, #tpu.memory_space<vmem>>, vector<8x64xf32>
    tpu.vector_store %arg3[%c0_3, %c0_4], %2 {strides = array<i32>} : memref<8x64xf32, #tpu.memory_space<vmem>>, vector<8x64xf32>,
    return
  }
  func.func @transform_0(%arg0: i32) -> (i32, i32) {
    %c0_i32 = arith.constant 0 : i32
    %c0_i32_0 = arith.constant 0 : i32
    return %arg0, %c0_i32 : i32, i32
  }
  func.func @transform_1(%arg0: i32) -> (i32, i32) {
    %c0_i32 = arith.constant 0 : i32
    %c0_i32_0 = arith.constant 0 : i32
    %c0_i32_1 = arith.constant 0 : i32
    return %c0_i32, %c0_i32_0 : i32, i32
  }
  func.func @transform_2(%arg0: i32) -> (i32, i32) {
    %c0_i32 = arith.constant 0 : i32
    %c0_i32_0 = arith.constant 0 : i32
    return %arg0, %c0_i32 : i32, i32
  }
}

</mosaic_0001>

<llo_original>
// kernel: tpu_custom_call.1
$region0: #{tpu_custom_call.1}
  #allocation0 [shape = 'u32[]', space=smem, size = 0x4, offset = 0x4, fixed_abs, tag = 'smem constant byte address 0x4 - core index']
  #allocation1 [shape = 'u32[144,128]{1,0:T(1,128)}', space=vmem, size = 0x12000, scoped, tag = 'internal scratch']
  %s0 = inlined_call_operand.hbm [shape: f32[16,32], index: 0, kind: input, shape index: {}]
  %s1 = inlined_call_operand.hbm [shape: f32[32,64], index: 1, kind: input, shape index: {}]
  %s2 = inlined_call_operand.hbm [shape: f32[16,64], index: 2, kind: output, shape index: {}]
  %s3 = sld [smem:[#allocation0]]
  $region49: #{tpu_custom_call.1} parent=0
    _
  %s5 = ssub.s32 1, %s3
  %s6 = scalar_select 0, %s5, %s3
  $region1: #{tpu_custom_call.1} parent=0
    #allocation2 [shape = 'u8[8192]{0}', space=vmem, size = 0x2000, scoped, tag = 'input window, operand 0']
    #allocation3 [shape = 's32[2]{0}', space=sflag, size = 0x8, scoped, tag = 'scoped memory for tpu_custom_call.1']
    #allocation4 [shape = 's32[2]{0}', space=sflag, size = 0x8, scoped, tag = 'scoped memory for tpu_custom_call.1']
    #allocation5 [shape = 'u8[16384]{0}', space=vmem, size = 0x4000, scoped, tag = 'input window, operand 1, single buffered']
    #allocation6 [shape = 's32[1]{0}', space=sflag, size = 0x4, scoped, tag = 'scoped memory for tpu_custom_call.1']
    #allocation7 [shape = 'u8[8192]{0}', space=vmem, size = 0x2000, scoped, tag = 'output window, operand 0']
    %7 = vsyncpa [#allocation3], 0
    %s8 = scalar_lea.sflag [#allocation3], 1
    %9 = vsyncpa %s8, 0
    %10 = vsyncpa [#allocation6], 0
    %11 = vsyncpa [#allocation4], 0
    %s12 = scalar_lea.sflag [#allocation4], 1
    %13 = vsyncpa %s12, 0
    loop: start=0, step=1, limit=4
    $region2: #{tpu_custom_call.1} parent=1 // loop_pre_header
      _
    $region3: #{tpu_custom_call.1} parent=1 // loop_header
      %s15 = sphi 0, %s19
      %p16 = scmp.ge.s32.totalorder %s15, 4
      %s25 = sphi 0, %s27
      %s28 = sphi 0, %s25
      %s29 = sphi 0, %s28
      %s45 = sphi 0, %s29
      %s49 = sphi 0, %s49
      %s51 = sphi 0, %s49
      %s52 = sphi 0, %s51
      %s66 = sphi 0, %s52
      %s72 = sphi 0, %s74
      %s75 = sphi 0, %s72
      %s76 = sphi 0, %s75
      %s92 = sphi 0, %s76
    $region4: #{tpu_custom_call.1} parent=1 // loop_header_branch
      %18 = sbr.rel (%p16) target = $region8
    $region5: #{tpu_custom_call.1} parent=1 // loop_body
      %s20 = ssub.s32 %s15, 1
      %s21 = ssub.s32 %s15, 2
      %s22 = sadd.s32 %s15, 1
      %s23 = ssub.s32 %s15, %s22
      %p24 = scmp.eq.s32.totalorder %s23, 0
      %s26 = sadd.s32 %s25, 1
      %s27 = scalar_select %p24, %s25, %s26
      %p30 = pneg %p24
      %p31 = scmp.eq.s32.totalorder %s15, 1
      %p32 = por %p30, %p31
      %p33 = scmp.ne.s32.totalorder %s25, %s28
      %p34 = scmp.eq.s32.totalorder %s15, 0
      %p35 = por %p33, %p34
      %p36 = scmp.ne.s32.totalorder %s25, %s28
      %p37 = scmp.eq.s32.totalorder %s20, 1
      %p38 = por %p36, %p37
      %p39 = scmp.ne.s32.totalorder %s28, %s29
      %p40 = scmp.eq.s32.totalorder %s20, 0
      %p41 = por %p39, %p40
      %p42 = scmp.ne.s32.totalorder %s28, %s29
      %p43 = scmp.eq.s32.totalorder %s21, 1
      %p44 = por %p42, %p43
      %p46 = scmp.ne.s32.totalorder %s29, %s45
      %p47 = scmp.eq.s32.totalorder %s21, 0
      %p48 = por %p46, %p47
      %s50 = sadd.s32 %s49, 1
      %p53 = scmp.eq.s32.totalorder %s15, 1
      %p54 = scmp.ne.s32.totalorder %s49, %s51
      %p55 = scmp.eq.s32.totalorder %s15, 0
      %p56 = por %p54, %p55
      %p57 = scmp.ne.s32.totalorder %s49, %s51
      %p58 = scmp.eq.s32.totalorder %s20, 1
      %p59 = por %p57, %p58
      %p60 = scmp.ne.s32.totalorder %s51, %s52
      %p61 = scmp.eq.s32.totalorder %s20, 0
      %p62 = por %p60, %p61
      %p63 = scmp.ne.s32.totalorder %s51, %s52
      %p64 = scmp.eq.s32.totalorder %s21, 1
      %p65 = por %p63, %p64
      %p67 = scmp.ne.s32.totalorder %s52, %s66
      %p68 = scmp.eq.s32.totalorder %s21, 0
      %p69 = por %p67, %p68
      %s70 = ssub.s32 %s15, %s22
      %p71 = scmp.eq.s32.totalorder %s70, 0
      %s73 = sadd.s32 %s72, 1
      %s74 = scalar_select %p71, %s72, %s73
      %p77 = pneg %p71
      %p78 = scmp.eq.s32.totalorder %s15, 1
      %p79 = por %p77, %p78
      %p80 = scmp.ne.s32.totalorder %s72, %s75
      %p81 = scmp.eq.s32.totalorder %s15, 0
      %p82 = por %p80, %p81
      %p83 = scmp.ne.s32.totalorder %s72, %s75
      %p84 = scmp.eq.s32.totalorder %s20, 1
      %p85 = por %p83, %p84
      %p86 = scmp.ne.s32.totalorder %s75, %s76
      %p87 = scmp.eq.s32.totalorder %s20, 0
      %p88 = por %p86, %p87
      %p89 = scmp.ne.s32.totalorder %s75, %s76
      %p90 = scmp.eq.s32.totalorder %s21, 1
      %p91 = por %p89, %p90
      %p93 = scmp.ne.s32.totalorder %s76, %s92
      %p94 = scmp.eq.s32.totalorder %s21, 0
      %p95 = por %p93, %p94
      %p96 = scmp.le.s32.totalorder 1, %s15
      %p97 = scmp.lt.s32.totalorder %s15, 3
      %p98 = pnand %p96, %p97
      %p99 = pneg %p98
      // Predicated region
      $region9: #{tpu_custom_call.1} parent=5 // pred_check
        _
      $region10: #{tpu_custom_call.1} parent=5 // pred_check_branch
        %101 = sbr.rel (%p98) target = $region12
      $region11: #{tpu_custom_call.1} parent=5 // pred_region
        %s102 = ssub.s32 %s15, 1
        // Predicated region
        $region13: #{tpu_custom_call.1} parent=11 // pred_check
          %p103 = pneg %p62
        $region14: #{tpu_custom_call.1} parent=11 // pred_check_branch
          %105 = sbr.rel (%p103) target = $region16
        $region15: #{tpu_custom_call.1} parent=11 // pred_region
          %s107 = ssub.s32 512, 512
          %108 = vsyncadd [#allocation6], %s107
          %s109 = sshll.u32 [#allocation5], 4
          %s110 = int_to_ptr.vmem [resolvable:$true] %s109
          %115 = dma.hbm_to_vmem [thread:$0]  %s1, 512, %s110, [#allocation6], 128, 128, 8
        $region16: #{tpu_custom_call.1} parent=11 // pred_fallthru
          _
      $region12: #{tpu_custom_call.1} parent=5 // pred_fallthru
        _
      %p116 = scmp.lt.s32.totalorder %s15, 2
      // Predicated region
      $region17: #{tpu_custom_call.1} parent=5 // pred_check
        %p117 = pneg %p116
      $region18: #{tpu_custom_call.1} parent=5 // pred_check_branch
        %119 = sbr.rel (%p117) target = $region20
      $region19: #{tpu_custom_call.1} parent=5 // pred_region
        // Predicated region
        $region21: #{tpu_custom_call.1} parent=19 // pred_check
          %p120 = pneg %p35
        $region22: #{tpu_custom_call.1} parent=19 // pred_check_branch
          %122 = sbr.rel (%p120) target = $region24
        $region23: #{tpu_custom_call.1} parent=19 // pred_region
          %s123 = sand.u32 %s25, 1
          %s124 = scalar_lea.sflag [#allocation3], %s123
          %s125 = sand.u32 %s25, 1
          %s126 = smul.addr %s125, 8
          %s127 = scalar_lea.vmem [#allocation2], %s126
          %s129 = ssub.s32 128, 128
          %130 = vsyncadd %s124, %s129
          %s131 = smul.addr %s15, 128
          %s132 = scalar_lea.hbm %s0, %s131
          %s134 = sshll.u32 %s127, 4
          %s135 = int_to_ptr.vmem [resolvable:$true] %s134
          %137 = dma.hbm_to_vmem [thread:$0]  %s132, 128, %s135, %s124
        $region24: #{tpu_custom_call.1} parent=19 // pred_fallthru
          _
      $region20: #{tpu_custom_call.1} parent=5 // pred_fallthru
        _
      %p138 = scmp.le.s32.totalorder 1, %s15
      %p139 = scmp.lt.s32.totalorder %s15, 3
      %p140 = pnand %p138, %p139
      %p141 = pneg %p140
      // Predicated region
      $region25: #{tpu_custom_call.1} parent=5 // pred_check
        _
      $region26: #{tpu_custom_call.1} parent=5 // pred_check_branch
        %143 = sbr.rel (%p140) target = $region28
      $region27: #{tpu_custom_call.1} parent=5 // pred_region
        %s144 = ssub.s32 %s15, 1
        %s145 = sand.u32 %s28, 1
        %s146 = scalar_lea.sflag [#allocation3], %s145
        %s147 = sand.u32 %s28, 1
        %s148 = smul.addr %s147, 8
        %s149 = scalar_lea.vmem [#allocation2], %s148
        // Predicated region
        $region29: #{tpu_custom_call.1} parent=27 // pred_check
          %p150 = pneg %p41
        $region30: #{tpu_custom_call.1} parent=27 // pred_check_branch
          %152 = sbr.rel (%p150) target = $region32
        $region31: #{tpu_custom_call.1} parent=27 // pred_region
          %153 = dma.done %s146, 128
        $region32: #{tpu_custom_call.1} parent=27 // pred_fallthru
          _
        // Predicated region
        $region33: #{tpu_custom_call.1} parent=27 // pred_check
          %p154 = pneg %p62
        $region34: #{tpu_custom_call.1} parent=27 // pred_check_branch
          %156 = sbr.rel (%p154) target = $region36
        $region35: #{tpu_custom_call.1} parent=27 // pred_region
          %157 = dma.done [#allocation6], 512
        $region36: #{tpu_custom_call.1} parent=27 // pred_fallthru
          _
        %s158 = sand.u32 %s28, 1
        %s159 = scalar_lea.sflag [#allocation3], %s158
        %s160 = sand.u32 %s28, 1
        %s161 = smul.addr %s160, 8
        %s162 = scalar_lea.vmem [#allocation2], %s161
        %p163 = pneg %p41
        %p164 = pneg %p38
        %p165 = pneg %p62
        %p166 = pneg %p59
        %p167 = pneg %p88
        %p168 = pneg %p85
        %s169 = sand.u32 %s75, 1
        %s170 = scalar_lea.sflag [#allocation4], %s169
        %s171 = sand.u32 %s75, 1
        %s172 = smul.addr %s171, 8
        %s173 = scalar_lea.vmem [#allocation7], %s172
        %v174 = vld [vmem:[%s149] sm:$0xff]
        %v175 = vld [vmem:[#allocation5] sm:$0xff]
        %v176 = vld [vmem:[#allocation5 + $0x8] sm:$0xff]
        %v177 = vld [vmem:[#allocation5 + $0x10] sm:$0xff]
        %v178 = vld [vmem:[#allocation5 + $0x18] sm:$0xff]
        %vm179 = vcmask 261120
        %v181 = vsel %vm179, %v174, 0
        %183 = vmatprep.subr.mxu0 0.0
        %184 = vmatpush1.msra.mxu0 %v175
        %185 = vmatprep.subr.mxu0 0.0
        %186 = vmatpush1.msra.mxu0 %v176
        %187 = vmatprep.subr.mxu0 0.0
        %188 = vmatpush1.msra.mxu0 %v177
        %189 = vmatprep.subr.mxu0 0.0
        %190 = vmatpush1.msra.mxu0 %v178
        %191 = vmatprep.subr.mxu0 0.0
        %192 = vmatpush1.msra.mxu0 0.0
        %193 = vmatprep.subr.mxu0 0.0
        %194 = vmatpush1.msra.mxu0 0.0
        %195 = vmatprep.subr.mxu0 0.0
        %196 = vmatpush1.msra.mxu0 0.0
        %197 = vmatprep.subr.mxu0 0.0
        %198 = vmatpush1.msra.mxu0 0.0
        %199 = vmatprep.subr.mxu0 0.0
        %200 = vmatpush1.msra.mxu0 0.0
        %201 = vmatprep.subr.mxu0 0.0
        %202 = vmatpush1.msra.mxu0 0.0
        %203 = vmatprep.subr.mxu0 0.0
        %204 = vmatpush1.msra.mxu0 0.0
        %205 = vmatprep.subr.mxu0 0.0
        %206 = vmatpush1.msra.mxu0 0.0
        %207 = vmatprep.subr.mxu0 0.0
        %208 = vmatpush1.msra.mxu0 0.0
        %209 = vmatprep.subr.mxu0 0.0
        %210 = vmatpush1.msra.mxu0 0.0
        %211 = vmatprep.subr.mxu0 0.0
        %212 = vmatpush1.msra.mxu0 0.0
        %213 = vmatprep.subr.mxu0 0.0
        %214 = vmatpush1.msra.mxu0 0.0
        %215 = vmatprep.subr.mxu0 0.0
        %216 = vmatpush1.msra.mxu0 0.0
        %217 = vmatprep.subr.mxu0 0.0
        %218 = vmatpush1.msra.mxu0 0.0
        %219 = vmatprep.subr.mxu0 0.0
        %220 = vmatpush1.msra.mxu0 0.0
        %221 = vmatprep.subr.mxu0 0.0
        %222 = vmatpush1.msra.mxu0 0.0
        %223 = vmatprep.subr.mxu0 0.0
        %224 = vmatpush1.msra.mxu0 0.0
        %225 = vmatprep.subr.mxu0 0.0
        %226 = vmatpush1.msra.mxu0 0.0
        %227 = vmatprep.subr.mxu0 0.0
        %228 = vmatpush1.msra.mxu0 0.0
        %229 = vmatprep.subr.mxu0 0.0
        %230 = vmatpush1.msra.mxu0 0.0
        %231 = vmatprep.subr.mxu0 0.0
        %232 = vmatpush1.msra.mxu0 0.0
        %233 = vmatprep.subr.mxu0 0.0
        %234 = vmatpush1.msra.mxu0 0.0
        %235 = vmatprep.subr.mxu0 0.0
        %236 = vmatpush1.msra.mxu0 0.0
        %237 = vmatprep.subr.mxu0 0.0
        %238 = vmatpush1.msra.mxu0 0.0
        %239 = vmatprep.subr.mxu0 0.0
        %240 = vmatpush1.msra.mxu0 0.0
        %241 = vmatprep.subr.mxu0 0.0
        %242 = vmatpush1.msra.mxu0 0.0
        %243 = vmatprep.subr.mxu0 0.0
        %244 = vmatpush1.msra.mxu0 0.0
        %245 = vmatprep.subr.mxu0 0.0
        %246 = vmatpush1.msra.mxu0 0.0
        %247 = vmatprep.mubr.f32.mxu0 0.0
        %248 = vmatmul.mubr.f32.gmra.mrb[0].mxu0 %v181
        %v249 = vpop.f32.mrb[0].mxu0
        %v250 = vadd.f32 0.0, %v249
        %v251 = vpop.f32.mrb[0].mxu0
        %252 = vdwg.mxu0
        %vm253 = vcmask 523264
        %254 = vst.msk [vmem:[%s173] sm:$0xff] %vm253, %v250
        %s255 = sand.u32 %s75, 1
        %s256 = scalar_lea.sflag [#allocation4], %s255
        %s257 = sand.u32 %s75, 1
        %s258 = smul.addr %s257, 8
        %s259 = scalar_lea.vmem [#allocation7], %s258
        // Predicated region
        $region37: #{tpu_custom_call.1} parent=27 // pred_check
          %p260 = pneg %p85
        $region38: #{tpu_custom_call.1} parent=27 // pred_check_branch
          %262 = sbr.rel (%p260) target = $region40
        $region39: #{tpu_custom_call.1} parent=27 // pred_region
          %s264 = ssub.s32 128, 128
          %265 = vsyncadd %s256, %s264
          %s266 = smul.addr %s20, 128
          %s267 = scalar_lea.hbm %s2, %s266
          %s269 = sshll.u32 %s259, 4
          %s270 = int_to_ptr.vmem [resolvable:$true] %s269
          %272 = dma.vmem_to_hbm [thread:$0]  %s270, 128, %s267, %s256
        $region40: #{tpu_custom_call.1} parent=27 // pred_fallthru
          _
      $region28: #{tpu_custom_call.1} parent=5 // pred_fallthru
        _
      %p273 = scmp.le.s32.totalorder 2, %s15
      // Predicated region
      $region41: #{tpu_custom_call.1} parent=5 // pred_check
        %p274 = pneg %p273
      $region42: #{tpu_custom_call.1} parent=5 // pred_check_branch
        %276 = sbr.rel (%p274) target = $region44
      $region43: #{tpu_custom_call.1} parent=5 // pred_region
        %s277 = ssub.s32 %s15, 2
        // Predicated region
        $region45: #{tpu_custom_call.1} parent=43 // pred_check
          %p278 = pneg %p91
        $region46: #{tpu_custom_call.1} parent=43 // pred_check_branch
          %280 = sbr.rel (%p278) target = $region48
        $region47: #{tpu_custom_call.1} parent=43 // pred_region
          %s281 = sand.u32 %s76, 1
          %s282 = scalar_lea.sflag [#allocation4], %s281
          %s283 = sand.u32 %s76, 1
          %s284 = smul.addr %s283, 8
          %s285 = scalar_lea.vmem [#allocation7], %s284
          %286 = dma.done %s282, 128
        $region48: #{tpu_custom_call.1} parent=43 // pred_fallthru
          _
      $region44: #{tpu_custom_call.1} parent=5 // pred_fallthru
        _
    $region6: #{tpu_custom_call.1} parent=1 // loop_footer
      %s19 = sadd.s32 1, %s15
    $region7: #{tpu_custom_call.1} parent=1 // loop_footer_branch
      %14 = sbr.rel target = $region3
    $region8: #{tpu_custom_call.1} parent=1 // loop_exit
      _
    %287 = vsyncpa [#allocation3], 1
    %s288 = scalar_lea.sflag [#allocation3], 1
    %289 = vsyncpa %s288, 1
    %290 = vsyncpa [#allocation6], 1
    %291 = vsyncpa [#allocation4], 1
    %s292 = scalar_lea.sflag [#allocation4], 1
    %293 = vsyncpa %s292, 1

</llo_original>
